<compile_context>
chip_gen: v6e
topology: v6e:2x2x1
jax: 0.10.0
libtpu: 0.0.40
codegen_flags: <defaults>
</compile_context>

<pallas_src>
import functools
import math

import jax
import jax.numpy as jnp
from jax import lax
from jax.experimental import pallas as pl
from jax.experimental.pallas import tpu as pltpu


# --------------------------------------------------------------------------
# Pass 1: fused K/V projection (runs once per source token).
# --------------------------------------------------------------------------
def _kv_proj_kernel(c_ref, wkvT_ref, bkv_ref, k_ref, v_ref):
    # c_ref:    (1, TS, C)   token-major source tile (compute_dtype)
    # wkvT_ref: (C, 2C)      fused, pre-transposed k|v projection
    # bkv_ref:  (1, 2C)      fused bias (f32)
    # k_ref, v_ref: (1, TS, C) outputs (compute_dtype)
    C = k_ref.shape[-1]
    kv = jnp.dot(c_ref[0], wkvT_ref[...],
                 preferred_element_type=jnp.float32) + bkv_ref[...]   # [TS, 2C] f32
    k_ref[0] = kv[:, :C].astype(k_ref.dtype)
    v_ref[0] = kv[:, C:].astype(v_ref.dtype)


# --------------------------------------------------------------------------
# Pass 2: Q projection + attention + output projection per (batch, q-tile).
# --------------------------------------------------------------------------
def _attn_kernel(x_ref, k_ref, v_ref, wqT_ref, bq_ref, wo_ref, bo_ref, o_ref, *,
                 n_heads, k_channels, compute_dtype, exp_dtype, approx_recip):
    # x_ref:   (1, TQ, C)    token-major query tile (compute_dtype)
    # k_ref:   (1, T_s, C)   precomputed keys   (compute_dtype)
    # v_ref:   (1, T_s, C)   precomputed values (compute_dtype)
    # wqT_ref: (C, C)        pre-transposed q projection (1/sqrt(dk) folded in)
    # wo_ref:  (out_C, C)    output projection (used via A @ B^T)
    # o_ref:   (1, out_C, TQ) output tile, written directly in NCT layout
    q = (jnp.dot(x_ref[0], wqT_ref[...],
                 preferred_element_type=jnp.float32)
         + bq_ref[...]).astype(compute_dtype)                         # [TQ, C]
    k = k_ref[0]                                                      # [T_s, C]
    v = v_ref[0]                                                      # [T_s, C]

    head_outs = []
    for h in range(n_heads):
        sl = slice(h * k_channels, (h + 1) * k_channels)
        q_h = q[:, sl]                                                # [TQ, dk]
        k_h = k[:, sl]                                                # [T_s, dk]
        v_h = v[:, sl]                                                # [T_s, dk]

        # scores = q_h @ k_h^T  (transposed-RHS contraction, MXU-native)
        s = lax.dot_general(q_h, k_h, (((1,), (1,)), ((), ())),
                            preferred_element_type=jnp.float32)       # [TQ, T_s]

        # softmax over keys; max/denominator in f32, exp in exp_dtype
        # (bf16 on v6e/v7x where the EUP supports it, f32 on v5e).
        m = jnp.max(s, axis=-1, keepdims=True)
        e = jnp.exp((s - m).astype(exp_dtype))
        denom = jnp.sum(e.astype(jnp.float32), axis=-1, keepdims=True)
        recip = pl.reciprocal(denom, approx=approx_recip).astype(exp_dtype)
        p = (e * recip).astype(compute_dtype)

        out_h = jnp.dot(p, v_h, preferred_element_type=jnp.float32)   # [TQ, dk]
        head_outs.append(out_h.astype(compute_dtype))

    # Single full-C output-projection GEMM (fills the MXU contraction depth):
    #   o = Wo @ out_full^T   with out_full = concat_h(out_h)  -> [out_C, TQ]
    out_full = jnp.concatenate(head_outs, axis=-1)                    # [TQ, C]
    o = lax.dot_general(wo_ref[...], out_full, (((1,), (1,)), ((), ())),
                        preferred_element_type=jnp.float32)           # [out_C, TQ]
    o_ref[0] = (o + bo_ref[...]).astype(o_ref.dtype)


# --------------------------------------------------------------------------
# Wrapper
# --------------------------------------------------------------------------
def _device_kind():
    try:
        return jax.devices()[0].device_kind.lower()
    except Exception:
        return ""


def _pick_exp_dtype(compute_dtype):
    # bf16 transcendentals are only fast on v6e / v7x; v5e and earlier have
    # no bf16 EUP, so keep the exp in f32 there.
    if jnp.dtype(compute_dtype) == jnp.dtype(jnp.float32):
        return jnp.dtype(jnp.float32)
    kind = _device_kind()
    if ("v6" in kind) or ("v7" in kind):
        return jnp.dtype(jnp.bfloat16)
    return jnp.dtype(jnp.float32)


def _vmem_cap_bytes():
    # v7x has 64 MiB physical VMEM per TensorCore -> leave headroom; the
    # older generations have 128 MiB.
    kind = _device_kind()
    if "v7" in kind:
        return 56 << 20
    return 100 << 20


def multi_head_attention(x, c, params, *, n_heads, tq_max=512, ts_max=512,
                         compute_dtype=jnp.bfloat16, vmem_limit_bytes=None):
    """x: [B, C, T_t], c: [B, C, T_s] float32 (PyTorch NCT). Returns [B, out_C, T_t]."""
    B, C, T_t = x.shape
    _, _, T_s = c.shape
    assert C % n_heads == 0
    k_channels = C // n_heads
    out_C = params['wo'].shape[0]
    compute_dtype = jnp.dtype(compute_dtype)
    cb = compute_dtype.itemsize

    scale = 1.0 / math.sqrt(k_channels)

    # Token-major, compute-dtype inputs: channel on the lane axis for the
    # projection GEMMs, and bf16 DMA blocks (half the HBM traffic / VMEM).
    x_btc = jnp.transpose(x, (0, 2, 1)).astype(compute_dtype)         # [B, T_t, C]
    c_btc = jnp.transpose(c, (0, 2, 1)).astype(compute_dtype)         # [B, T_s, C]

    # Pre-transposed / fused 1x1-conv weights (converted once per call).
    # The 1/sqrt(dk) attention scale is folded into the Q projection here.
    wqT = (params['wq'] * scale).T.astype(compute_dtype)              # [C, C]
    bq = (params['bq'] * scale).reshape(1, C).astype(jnp.float32)
    wkvT = jnp.concatenate([params['wk'], params['wv']], axis=0).T \
              .astype(compute_dtype)                                  # [C, 2C]
    bkv = jnp.concatenate([params['bk'], params['bv']]) \
             .reshape(1, 2 * C).astype(jnp.float32)
    wo = params['wo'].astype(compute_dtype)                           # [out_C, C]
    bo = params['bo'].reshape(out_C, 1).astype(jnp.float32)

    # ---------------- Pass 1: K/V projection (once per source token) -------
    ts_max = max(128, (ts_max // 128) * 128)
    ts = T_s if T_s <= ts_max else ts_max
    n_s = pl.cdiv(T_s, ts)

    k_btc, v_btc = pl.pallas_call(
        _kv_proj_kernel,
        out_shape=(jax.ShapeDtypeStruct((B, T_s, C), compute_dtype),
                   jax.ShapeDtypeStruct((B, T_s, C), compute_dtype)),
        grid_spec=pltpu.PrefetchScalarGridSpec(
            num_scalar_prefetch=0,
            grid=(B, n_s),
            in_specs=[
                pl.BlockSpec((1, ts, C), lambda b, si: (b, si, 0)),   # c tile
                pl.BlockSpec((C, 2 * C), lambda b, si: (0, 0)),       # wkvT
                pl.BlockSpec((1, 2 * C), lambda b, si: (0, 0)),       # bkv
            ],
            out_specs=[
                pl.BlockSpec((1, ts, C), lambda b, si: (b, si, 0)),   # k
                pl.BlockSpec((1, ts, C), lambda b, si: (b, si, 0)),   # v
            ],
        ),
        compiler_params=pltpu.CompilerParams(
            dimension_semantics=("parallel", "parallel")),
    )(c_btc, wkvT, bkv)

    # ---------------- Pass 2: attention over (batch, query-tile) -----------
    # Query tiling: TQ is either the whole sequence or a multiple of 128 so
    # the x block (sublane axis) and the NCT output block (lane axis) stay
    # aligned and output stores are unmasked.
    tq_max = max(128, (tq_max // 128) * 128)
    tq = T_t if T_t <= tq_max else tq_max
    n_q = pl.cdiv(T_t, tq)
    # Guarantee >= 2 "parallel" grid steps when possible so both v7x
    # TensorCores get work even for single-batch calls (and DMA overlaps).
    if B * n_q < 2 and T_t > 128:
        tq = 128 * pl.cdiv(T_t, 2 * 128)
        n_q = pl.cdiv(T_t, tq)

    exp_dtype = _pick_exp_dtype(compute_dtype)
    approx_recip = compute_dtype != jnp.dtype(jnp.float32)

    if vmem_limit_bytes is None:
        blocks = (2 * tq * C * cb                     # x tile, double-buffered
                  + 2 * 2 * T_s * C * cb              # k + v, double-buffered
                  + 2 * (C * C + out_C * C) * cb      # wqT, wo
                  + 2 * (3 * C + out_C) * 4           # biases
                  + 2 * out_C * tq * 4)               # output tile
        interm = (tq * C * 4                          # q (f32)
                  + 3 * tq * T_s * 4                  # scores / exp copies
                  + tq * C * cb                       # concatenated head outs
                  + out_C * tq * 4)                   # projected output (f32)
        vmem_limit_bytes = int(min(max(int(1.5 * (blocks + interm)), 32 << 20),
                                   _vmem_cap_bytes()))

    kernel = functools.partial(
        _attn_kernel, n_heads=n_heads, k_channels=k_channels,
        compute_dtype=compute_dtype, exp_dtype=exp_dtype,
        approx_recip=approx_recip)

    const = lambda shape: pl.BlockSpec(shape, lambda b, qi: (0, 0))

    out = pl.pallas_call(
        kernel,
        out_shape=jax.ShapeDtypeStruct((B, out_C, T_t), jnp.float32),
        grid_spec=pltpu.PrefetchScalarGridSpec(
            num_scalar_prefetch=0,
            grid=(B, n_q),
            in_specs=[
                pl.BlockSpec((1, tq, C), lambda b, qi: (b, qi, 0)),   # query tile
                pl.BlockSpec((1, T_s, C), lambda b, qi: (b, 0, 0)),   # keys
                pl.BlockSpec((1, T_s, C), lambda b, qi: (b, 0, 0)),   # values
                const((C, C)), const((1, C)),                         # wqT, bq
                const((out_C, C)), const((out_C, 1)),                 # wo,  bo
            ],
            out_specs=pl.BlockSpec((1, out_C, tq), lambda b, qi: (b, 0, qi)),
        ),
        compiler_params=pltpu.CompilerParams(
            dimension_semantics=("parallel", "parallel"),
            vmem_limit_bytes=vmem_limit_bytes),
    )(x_btc, k_btc, v_btc, wqT, bq, wo, bo)

    return out                                                        # [B, out_C, T_t]


# --------------------------------------------------------------------------
# Parameter init & pure-JAX reference (mirrors the PyTorch module defaults)
# --------------------------------------------------------------------------
def _xavier_uniform(key, out_c, in_c):
    bound = math.sqrt(6.0 / (in_c + out_c))
    return jax.random.uniform(key, (out_c, in_c), jnp.float32, -bound, bound)


def init_params(key, channels, out_channels):
    ks = jax.random.split(key, 8)
    b_bound = 1.0 / math.sqrt(channels)
    return {
        'wq': _xavier_uniform(ks[0], channels, channels),
        'bq': jax.random.uniform(ks[1], (channels,), jnp.float32, -b_bound, b_bound),
        'wk': _xavier_uniform(ks[2], channels, channels),
        'bk': jax.random.uniform(ks[3], (channels,), jnp.float32, -b_bound, b_bound),
        'wv': _xavier_uniform(ks[4], channels, channels),
        'bv': jax.random.uniform(ks[5], (channels,), jnp.float32, -b_bound, b_bound),
        'wo': _xavier_uniform(ks[6], out_channels, channels),
        'bo': jax.random.uniform(ks[7], (out_channels,), jnp.float32, -b_bound, b_bound),
    }


def _reference(x, c, params, *, n_heads):
    B, C, T_t = x.shape
    T_s = c.shape[2]
    dk = C // n_heads
    q = jnp.einsum('oc,bct->bot', params['wq'], x) + params['bq'][None, :, None]
    k = jnp.einsum('oc,bct->bot', params['wk'], c) + params['bk'][None, :, None]
    v = jnp.einsum('oc,bct->bot', params['wv'], c) + params['bv'][None, :, None]
    qh = q.reshape(B, n_heads, dk, T_t).transpose(0, 1, 3, 2)
    kh = k.reshape(B, n_heads, dk, T_s).transpose(0, 1, 3, 2)
    vh = v.reshape(B, n_heads, dk, T_s).transpose(0, 1, 3, 2)
    scores = jnp.einsum('bhtd,bhsd->bhts', qh, kh) / math.sqrt(dk)
    p = jax.nn.softmax(scores, axis=-1)
    out = jnp.einsum('bhts,bhsd->bhtd', p, vh)
    out = out.transpose(0, 1, 3, 2).reshape(B, C, T_t)
    return jnp.einsum('oc,bct->bot', params['wo'], out) + params['bo'][None, :, None]


if __name__ == "__main__":
    B, channels, out_channels, n_heads, T = 2, 64, 64, 2, 256

    key = jax.random.PRNGKey(0)
    kx, kc, kp = jax.random.split(key, 3)
    x = jax.random.normal(kx, (B, channels, T), jnp.float32)   # [B, C, T]
    c = jax.random.normal(kc, (B, channels, T), jnp.float32)   # [B, C, T]
    params = init_params(kp, channels, out_channels)

    ref = _reference(x, c, params, n_heads=n_heads)

    # Default (bf16 MXU, bf16-exp where supported) path: grid = (B, 1).
    out = jax.block_until_ready(multi_head_attention(x, c, params, n_heads=n_heads))
    assert out.shape == (B, out_channels, T)
    assert jnp.allclose(out, ref, rtol=1e-1, atol=1e-1), "bf16 kernel mismatch vs reference"

    # f32 compute path with query- and key-source tiling exercised: grid = (B, 2)
    # for attention and (B, 2) for the K/V projection; tight check.
    out32 = jax.block_until_ready(
        multi_head_attention(x, c, params, n_heads=n_heads,
                             compute_dtype=jnp.float32, tq_max=128, ts_max=128))
    assert jnp.allclose(out32, ref, rtol=2e-2, atol=2e-2), "f32 kernel mismatch vs reference"

    print("KERNEL_OK")
</pallas_src>

<mosaic_0001>
module attributes {stable_mosaic.version = 11 : i64} {
  func.func @_kv_proj_kernel(%arg0: i32, %arg1: i32, %arg2: memref<1x256x64xbf16, #tpu.memory_space<vmem>>, %arg3: memref<64x128xbf16, #tpu.memory_space<vmem>>, %arg4: memref<1x128xf32, #tpu.memory_space<vmem>>, %arg5: memref<1x256x64xbf16, #tpu.memory_space<vmem>>, %arg6: memref<1x256x64xbf16, #tpu.memory_space<vmem>>) attributes {dimension_semantics = [#tpu.dimension_semantics<parallel>, #tpu.dimension_semantics<parallel>], iteration_bounds = array<i64: 2, 1>, scalar_prefetch = 0 : i64, scratch_operands = 0 : i64, tpu.core_type = #tpu.core_type<tc>, window_params = [{transform_indices = @transform_0, window_bounds = array<i64: 1, 256, 64>}, {pipeline_mode = #tpu.pipeline_mode<synchronous>, transform_indices = @transform_1, window_bounds = array<i64: 64, 128>}, {pipeline_mode = #tpu.pipeline_mode<synchronous>, transform_indices = @transform_2, window_bounds = array<i64: 1, 128>}, {transform_indices = @transform_3, window_bounds = array<i64: 1, 256, 64>}, {transform_indices = @transform_4, window_bounds = array<i64: 1, 256, 64>}]} {
    %c0 = arith.constant 0 : index
    %c0_0 = arith.constant 0 : index
    %c0_1 = arith.constant 0 : index
    %0 = vector.load %arg2[%c0, %c0_0, %c0_1] : memref<1x256x64xbf16, #tpu.memory_space<vmem>>, vector<1x256x64xbf16>
    %1 = vector.shape_cast %0 : vector<1x256x64xbf16> to vector<256x64xbf16>
    %c0_2 = arith.constant 0 : index
    %c0_3 = arith.constant 0 : index
    %2 = vector.load %arg3[%c0_2, %c0_3] : memref<64x128xbf16, #tpu.memory_space<vmem>>, vector<64x128xbf16>
    %cst = arith.constant dense<0.000000e+00> : vector<256x128xf32>
    %3 = tpu.matmul %1, %2, %cst {dimension_numbers = #tpu.dot_dimension_numbers<[1], [0], [0], [1], [0, 0, 1, 1], [], []>} : vector<256x64xbf16>, vector<64x128xbf16>, vector<256x128xf32> -> vector<256x128xf32>
    %c0_4 = arith.constant 0 : index
    %c0_5 = arith.constant 0 : index
    %4 = vector.load %arg4[%c0_4, %c0_5] : memref<1x128xf32, #tpu.memory_space<vmem>>, vector<1x128xf32>
    %5 = vector.broadcast %4 : vector<1x128xf32> to vector<256x128xf32>
    %6 = arith.addf %3, %5 : vector<256x128xf32>
    %7 = vector.extract_strided_slice %6 {offsets = [0, 0], sizes = [256, 64], strides = [1, 1]} : vector<256x128xf32> to vector<256x64xf32>
    %8 = arith.truncf %7 : vector<256x64xf32> to vector<256x64xbf16>
    %c0_6 = arith.constant 0 : index
    %c0_7 = arith.constant 0 : index
    %c0_8 = arith.constant 0 : index
    %9 = vector.load %arg5[%c0_6, %c0_7, %c0_8] : memref<1x256x64xbf16, #tpu.memory_space<vmem>>, vector<1x256x64xbf16>
    %10 = vector.shape_cast %9 : vector<1x256x64xbf16> to vector<256x64xbf16>
    %11 = vector.shape_cast %8 : vector<256x64xbf16> to vector<1x256x64xbf16>
    tpu.vector_store %arg5[%c0_6, %c0_7, %c0_8], %11 {strides = array<i32>} : memref<1x256x64xbf16, #tpu.memory_space<vmem>>, vector<1x256x64xbf16>,
    %12 = vector.extract_strided_slice %6 {offsets = [0, 64], sizes = [256, 64], strides = [1, 1]} : vector<256x128xf32> to vector<256x64xf32>
    %13 = arith.truncf %12 : vector<256x64xf32> to vector<256x64xbf16>
    %c0_9 = arith.constant 0 : index
    %c0_10 = arith.constant 0 : index
    %c0_11 = arith.constant 0 : index
    %14 = vector.load %arg6[%c0_9, %c0_10, %c0_11] : memref<1x256x64xbf16, #tpu.memory_space<vmem>>, vector<1x256x64xbf16>
    %15 = vector.shape_cast %14 : vector<1x256x64xbf16> to vector<256x64xbf16>
    %16 = vector.shape_cast %13 : vector<256x64xbf16> to vector<1x256x64xbf16>
    tpu.vector_store %arg6[%c0_9, %c0_10, %c0_11], %16 {strides = array<i32>} : memref<1x256x64xbf16, #tpu.memory_space<vmem>>, vector<1x256x64xbf16>,
    return
  }
  func.func @transform_0(%arg0: i32, %arg1: i32) -> (i32, i32, i32) {
    %c0_i32 = arith.constant 0 : i32
    %c0_i32_0 = arith.constant 0 : i32
    return %arg0, %arg1, %c0_i32 : i32, i32, i32
  }
  func.func @transform_1(%arg0: i32, %arg1: i32) -> (i32, i32) {
    %c0_i32 = arith.constant 0 : i32
    %c0_i32_0 = arith.constant 0 : i32
    %c0_i32_1 = arith.constant 0 : i32
    return %c0_i32, %c0_i32_0 : i32, i32
  }
  func.func @transform_2(%arg0: i32, %arg1: i32) -> (i32, i32) {
    %c0_i32 = arith.constant 0 : i32
    %c0_i32_0 = arith.constant 0 : i32
    %c0_i32_1 = arith.constant 0 : i32
    return %c0_i32, %c0_i32_0 : i32, i32
  }
  func.func @transform_3(%arg0: i32, %arg1: i32) -> (i32, i32, i32) {
    %c0_i32 = arith.constant 0 : i32
    %c0_i32_0 = arith.constant 0 : i32
    return %arg0, %arg1, %c0_i32 : i32, i32, i32
  }
  func.func @transform_4(%arg0: i32, %arg1: i32) -> (i32, i32, i32) {
    %c0_i32 = arith.constant 0 : i32
    %c0_i32_0 = arith.constant 0 : i32
    return %arg0, %arg1, %c0_i32 : i32, i32, i32
  }
}

</mosaic_0001>

<llo_original>
// kernel: tpu_custom_call.1
$region0: #{tpu_custom_call.1}
  #allocation0 [shape = 'u32[]', space=smem, size = 0x4, offset = 0x4, fixed_abs, tag = 'smem constant byte address 0x4 - core index']
  #allocation1 [shape = 'u32[144,128]{1,0:T(1,128)}', space=vmem, size = 0x12000, scoped, tag = 'internal scratch']
  %s0 = inlined_call_operand.vmem [shape: bf16[2,256,64], index: 0, kind: input, shape index: {}]
  %s1 = inlined_call_operand.vmem [shape: bf16[64,128], index: 1, kind: input, shape index: {}]
  %s2 = inlined_call_operand.vmem [shape: f32[1,128], index: 2, kind: input, shape index: {}]
  %s3 = inlined_call_operand.vmem [shape: bf16[2,256,64], index: 3, kind: output, shape index: {0}]
  %s4 = inlined_call_operand.vmem [shape: bf16[2,256,64], index: 4, kind: output, shape index: {1}]
  %5 = xla_tuple %s3, %s4
  %s6 = sld [smem:[#allocation0]]
  $region53: #{tpu_custom_call.1} parent=0
    _
  %s8 = ssub.s32 1, %s6
  %s9 = scalar_select 0, %s8, %s6
  loop: start=0, step=1, limit=4
  $region2: #{tpu_custom_call.1} parent=0 // loop_pre_header
    _
  $region3: #{tpu_custom_call.1} parent=0 // loop_header
    %s11 = sphi 0, %s15
    %p12 = scmp.ge.s32.totalorder %s11, 4
    %s18 = sphi 0, %s30
    %s19 = sphi 0, %s26
    %s20 = sphi 0, %s18
    %s21 = sphi 0, %s19
    %s22 = sphi 0, %s20
    %s23 = sphi 0, %s21
    %s35 = sphi 0, %s37
    %s38 = sphi 0, %s35
    %s39 = sphi 0, %s38
    %s55 = sphi 0, %s39
    %s59 = sphi 0, %s59
    %s61 = sphi 0, %s59
    %s62 = sphi 0, %s61
    %s76 = sphi 0, %s62
    %s80 = sphi 0, %s80
    %s82 = sphi 0, %s80
    %s83 = sphi 0, %s82
    %s97 = sphi 0, %s83
    %s105 = sphi 0, %s107
    %s108 = sphi 0, %s105
    %s109 = sphi 0, %s108
    %s125 = sphi 0, %s109
    %s133 = sphi 0, %s135
    %s136 = sphi 0, %s133
    %s137 = sphi 0, %s136
    %s153 = sphi 0, %s137
  $region4: #{tpu_custom_call.1} parent=0 // loop_header_branch
    %14 = sbr.rel (%p12) target = $region8
  $region5: #{tpu_custom_call.1} parent=0 // loop_body
    %s16 = ssub.s32 %s11, 1
    %s17 = ssub.s32 %s11, 2
    %s24 = sadd.s32 1, %s19
    %p25 = scmp.ge.s32.totalorder %s24, 1
    %s26 = scalar_select %p25, 0, %s24
    %s27 = sadd.s32 1, %s18
    %s28 = scalar_select %p25, %s27, %s18
    %p29 = scmp.ge.s32.totalorder %s28, 2
    %s30 = scalar_select %p29, 0, %s28
    %s31 = ssub.s32 %s18, %s30
    %s32 = ssub.s32 %s19, %s26
    %s33 = sor.u32 %s31, %s32
    %p34 = scmp.eq.s32.totalorder %s33, 0
    %s36 = sadd.s32 %s35, 1
    %s37 = scalar_select %p34, %s35, %s36
    %p40 = pneg %p34
    %p41 = scmp.eq.s32.totalorder %s11, 1
    %p42 = por %p40, %p41
    %p43 = scmp.ne.s32.totalorder %s35, %s38
    %p44 = scmp.eq.s32.totalorder %s11, 0
    %p45 = por %p43, %p44
    %p46 = scmp.ne.s32.totalorder %s35, %s38
    %p47 = scmp.eq.s32.totalorder %s16, 1
    %p48 = por %p46, %p47
    %p49 = scmp.ne.s32.totalorder %s38, %s39
    %p50 = scmp.eq.s32.totalorder %s16, 0
    %p51 = por %p49, %p50
    %p52 = scmp.ne.s32.totalorder %s38, %s39
    %p53 = scmp.eq.s32.totalorder %s17, 1
    %p54 = por %p52, %p53
    %p56 = scmp.ne.s32.totalorder %s39, %s55
    %p57 = scmp.eq.s32.totalorder %s17, 0
    %p58 = por %p56, %p57
    %s60 = sadd.s32 %s59, 1
    %p63 = scmp.eq.s32.totalorder %s11, 1
    %p64 = scmp.ne.s32.totalorder %s59, %s61
    %p65 = scmp.eq.s32.totalorder %s11, 0
    %p66 = por %p64, %p65
    %p67 = scmp.ne.s32.totalorder %s59, %s61
    %p68 = scmp.eq.s32.totalorder %s16, 1
    %p69 = por %p67, %p68
    %p70 = scmp.ne.s32.totalorder %s61, %s62
    %p71 = scmp.eq.s32.totalorder %s16, 0
    %p72 = por %p70, %p71
    %p73 = scmp.ne.s32.totalorder %s61, %s62
    %p74 = scmp.eq.s32.totalorder %s17, 1
    %p75 = por %p73, %p74
    %p77 = scmp.ne.s32.totalorder %s62, %s76
    %p78 = scmp.eq.s32.totalorder %s17, 0
    %p79 = por %p77, %p78
    %s81 = sadd.s32 %s80, 1
    %p84 = scmp.eq.s32.totalorder %s11, 1
    %p85 = scmp.ne.s32.totalorder %s80, %s82
    %p86 = scmp.eq.s32.totalorder %s11, 0
    %p87 = por %p85, %p86
    %p88 = scmp.ne.s32.totalorder %s80, %s82
    %p89 = scmp.eq.s32.totalorder %s16, 1
    %p90 = por %p88, %p89
    %p91 = scmp.ne.s32.totalorder %s82, %s83
    %p92 = scmp.eq.s32.totalorder %s16, 0
    %p93 = por %p91, %p92
    %p94 = scmp.ne.s32.totalorder %s82, %s83
    %p95 = scmp.eq.s32.totalorder %s17, 1
    %p96 = por %p94, %p95
    %p98 = scmp.ne.s32.totalorder %s83, %s97
    %p99 = scmp.eq.s32.totalorder %s17, 0
    %p100 = por %p98, %p99
    %s101 = ssub.s32 %s18, %s30
    %s102 = ssub.s32 %s19, %s26
    %s103 = sor.u32 %s101, %s102
    %p104 = scmp.eq.s32.totalorder %s103, 0
    %s106 = sadd.s32 %s105, 1
    %s107 = scalar_select %p104, %s105, %s106
    %p110 = pneg %p104
    %p111 = scmp.eq.s32.totalorder %s11, 1
    %p112 = por %p110, %p111
    %p113 = scmp.ne.s32.totalorder %s105, %s108
    %p114 = scmp.eq.s32.totalorder %s11, 0
    %p115 = por %p113, %p114
    %p116 = scmp.ne.s32.totalorder %s105, %s108
    %p117 = scmp.eq.s32.totalorder %s16, 1
    %p118 = por %p116, %p117
    %p119 = scmp.ne.s32.totalorder %s108, %s109
    %p120 = scmp.eq.s32.totalorder %s16, 0
    %p121 = por %p119, %p120
    %p122 = scmp.ne.s32.totalorder %s108, %s109
    %p123 = scmp.eq.s32.totalorder %s17, 1
    %p124 = por %p122, %p123
    %p126 = scmp.ne.s32.totalorder %s109, %s125
    %p127 = scmp.eq.s32.totalorder %s17, 0
    %p128 = por %p126, %p127
    %s129 = ssub.s32 %s18, %s30
    %s130 = ssub.s32 %s19, %s26
    %s131 = sor.u32 %s129, %s130
    %p132 = scmp.eq.s32.totalorder %s131, 0
    %s134 = sadd.s32 %s133, 1
    %s135 = scalar_select %p132, %s133, %s134
    %p138 = pneg %p132
    %p139 = scmp.eq.s32.totalorder %s11, 1
    %p140 = por %p138, %p139
    %p141 = scmp.ne.s32.totalorder %s133, %s136
    %p142 = scmp.eq.s32.totalorder %s11, 0
    %p143 = por %p141, %p142
    %p144 = scmp.ne.s32.totalorder %s133, %s136
    %p145 = scmp.eq.s32.totalorder %s16, 1
    %p146 = por %p144, %p145
    %p147 = scmp.ne.s32.totalorder %s136, %s137
    %p148 = scmp.eq.s32.totalorder %s16, 0
    %p149 = por %p147, %p148
    %p150 = scmp.ne.s32.totalorder %s136, %s137
    %p151 = scmp.eq.s32.totalorder %s17, 1
    %p152 = por %p150, %p151
    %p154 = scmp.ne.s32.totalorder %s137, %s153
    %p155 = scmp.eq.s32.totalorder %s17, 0
    %p156 = por %p154, %p155
    %p157 = scmp.le.s32.totalorder 1, %s11
    %p158 = scmp.lt.s32.totalorder %s11, 3
    %p159 = pnand %p157, %p158
    %p160 = pneg %p159
    // Predicated region
    $region9: #{tpu_custom_call.1} parent=5 // pred_check
      _
    $region10: #{tpu_custom_call.1} parent=5 // pred_check_branch
      %162 = sbr.rel (%p159) target = $region12
    $region11: #{tpu_custom_call.1} parent=5 // pred_region
      %s163 = ssub.s32 %s11, 1
      // Predicated region
      $region13: #{tpu_custom_call.1} parent=11 // pred_check
        %p164 = pneg %p72
      $region14: #{tpu_custom_call.1} parent=11 // pred_check_branch
        %166 = sbr.rel (%p164) target = $region16
      $region15: #{tpu_custom_call.1} parent=11 // pred_region
        _
      $region16: #{tpu_custom_call.1} parent=11 // pred_fallthru
        _
      // Predicated region
      $region17: #{tpu_custom_call.1} parent=11 // pred_check
        %p167 = pneg %p93
      $region18: #{tpu_custom_call.1} parent=11 // pred_check_branch
        %169 = sbr.rel (%p167) target = $region20
      $region19: #{tpu_custom_call.1} parent=11 // pred_region
        _
      $region20: #{tpu_custom_call.1} parent=11 // pred_fallthru
        _
    $region12: #{tpu_custom_call.1} parent=5 // pred_fallthru
      _
    %p170 = scmp.lt.s32.totalorder %s11, 2
    // Predicated region
    $region21: #{tpu_custom_call.1} parent=5 // pred_check
      %p171 = pneg %p170
    $region22: #{tpu_custom_call.1} parent=5 // pred_check_branch
      %173 = sbr.rel (%p171) target = $region24
    $region23: #{tpu_custom_call.1} parent=5 // pred_region
      // Predicated region
      $region25: #{tpu_custom_call.1} parent=23 // pred_check
        %p174 = pneg %p45
      $region26: #{tpu_custom_call.1} parent=23 // pred_check_branch
        %176 = sbr.rel (%p174) target = $region28
      $region27: #{tpu_custom_call.1} parent=23 // pred_region
        %s177 = smul.u32 32, %s19
        %p178 = scmp.lt.s32.totalorder %s18, 1
        %s179 = scalar_select %p178, %s18, 1
        %p180 = scmp.lt.s32.totalorder %s177, 31
        %s181 = scalar_select %p180, %s177, 31
        %s182 = smul.addr %s179, 32
        %s183 = sadd.s32 %s181, %s182
        %s184 = smul.addr %s183, 4
        %s185 = scalar_lea.vmem %s0, %s184
        %s186 = smul.u32 32, %s19
      $region28: #{tpu_custom_call.1} parent=23 // pred_fallthru
        _
    $region24: #{tpu_custom_call.1} parent=5 // pred_fallthru
      _
    %p187 = scmp.le.s32.totalorder 1, %s11
    %p188 = scmp.lt.s32.totalorder %s11, 3
    %p189 = pnand %p187, %p188
    %p190 = pneg %p189
    // Predicated region
    $region29: #{tpu_custom_call.1} parent=5 // pred_check
      _
    $region30: #{tpu_custom_call.1} parent=5 // pred_check_branch
      %192 = sbr.rel (%p189) target = $region32
    $region31: #{tpu_custom_call.1} parent=5 // pred_region
      %s193 = ssub.s32 %s11, 1
      %s194 = smul.u32 32, %s21
      %p195 = scmp.lt.s32.totalorder %s20, 1
      %s196 = scalar_select %p195, %s20, 1
      %p197 = scmp.lt.s32.totalorder %s194, 31
      %s198 = scalar_select %p197, %s194, 31
      %s199 = smul.addr %s196, 32
      %s200 = sadd.s32 %s198, %s199
      %s201 = smul.addr %s200, 4
      %s202 = scalar_lea.vmem %s0, %s201
      %p203 = pneg %p51
      %p204 = pneg %p48
      %p205 = pneg %p72
      %p206 = pneg %p69
      %p207 = pneg %p93
      %p208 = pneg %p90
      %p209 = pneg %p121
      %p210 = pneg %p118
      %s211 = smul.u32 32, %s21
      %p212 = scmp.lt.s32.totalorder %s20, 1
      %s213 = scalar_select %p212, %s20, 1
      %p214 = scmp.lt.s32.totalorder %s211, 31
      %s215 = scalar_select %p214, %s211, 31
      %s216 = smul.addr %s213, 32
      %s217 = sadd.s32 %s215, %s216
      %s218 = smul.addr %s217, 4
      %s219 = scalar_lea.vmem %s3, %s218
      %p220 = pneg %p149
      %p221 = pneg %p146
      %s222 = smul.u32 32, %s21
      %p223 = scmp.lt.s32.totalorder %s20, 1
      %s224 = scalar_select %p223, %s20, 1
      %p225 = scmp.lt.s32.totalorder %s222, 31
      %s226 = scalar_select %p225, %s222, 31
      %s227 = smul.addr %s224, 32
      %s228 = sadd.s32 %s226, %s227
      %s229 = smul.addr %s228, 4
      %s230 = scalar_lea.vmem %s4, %s229
      %s231 = smul.u32 32, %s21
      %p232 = scmp.lt.s32.totalorder %s20, 1
      %s233 = scalar_select %p232, %s20, 1
      %p234 = scmp.lt.s32.totalorder %s231, 31
      %s235 = scalar_select %p234, %s231, 31
      %s236 = smul.addr %s233, 32
      %s237 = sadd.s32 %s235, %s236
      %s238 = smul.addr %s237, 4
      %s239 = scalar_lea.vmem %s0, %s238
      %s240 = smul.u32 32, %s21
      %s241 = smul.u32 32, %s21
      %p242 = scmp.lt.s32.totalorder %s20, 1
      %s243 = scalar_select %p242, %s20, 1
      %p244 = scmp.lt.s32.totalorder %s241, 31
      %s245 = scalar_select %p244, %s241, 31
      %s246 = smul.addr %s243, 32
      %s247 = sadd.s32 %s245, %s246
      %s248 = smul.addr %s247, 4
      %s249 = scalar_lea.vmem %s3, %s248
      %s250 = smul.u32 32, %s21
      %s251 = smul.u32 32, %s21
      %p252 = scmp.lt.s32.totalorder %s20, 1
      %s253 = scalar_select %p252, %s20, 1
      %p254 = scmp.lt.s32.totalorder %s251, 31
      %s255 = scalar_select %p254, %s251, 31
      %s256 = smul.addr %s253, 32
      %s257 = sadd.s32 %s255, %s256
      %s258 = smul.addr %s257, 4
      %s259 = scalar_lea.vmem %s4, %s258
      %s260 = smul.u32 32, %s21
      %v262 = vld [vmem:[%s239] sm:$0xf]
      %v263 = vld [vmem:[%s239 + $0x4] sm:$0xf]
      %v264 = vld [vmem:[%s239 + $0x8] sm:$0xf]
      %v265 = vld [vmem:[%s239 + $0xc] sm:$0xf]
      %v266 = vld [vmem:[%s239 + $0x10] sm:$0xf]
      %v267 = vld [vmem:[%s239 + $0x14] sm:$0xf]
      %v268 = vld [vmem:[%s239 + $0x18] sm:$0xf]
      %v269 = vld [vmem:[%s239 + $0x1c] sm:$0xf]
      %v270 = vld [vmem:[%s239 + $0x20] sm:$0xf]
      %v271 = vld [vmem:[%s239 + $0x24] sm:$0xf]
      %v272 = vld [vmem:[%s239 + $0x28] sm:$0xf]
      %v273 = vld [vmem:[%s239 + $0x2c] sm:$0xf]
      %v274 = vld [vmem:[%s239 + $0x30] sm:$0xf]
      %v275 = vld [vmem:[%s239 + $0x34] sm:$0xf]
      %v276 = vld [vmem:[%s239 + $0x38] sm:$0xf]
      %v277 = vld [vmem:[%s239 + $0x3c] sm:$0xf]
      %v278 = vld [vmem:[%s239 + $0x40] sm:$0xf]
      %v279 = vld [vmem:[%s239 + $0x44] sm:$0xf]
      %v280 = vld [vmem:[%s239 + $0x48] sm:$0xf]
      %v281 = vld [vmem:[%s239 + $0x4c] sm:$0xf]
      %v282 = vld [vmem:[%s239 + $0x50] sm:$0xf]
      %v283 = vld [vmem:[%s239 + $0x54] sm:$0xf]
      %v284 = vld [vmem:[%s239 + $0x58] sm:$0xf]
      %v285 = vld [vmem:[%s239 + $0x5c] sm:$0xf]
      %v286 = vld [vmem:[%s239 + $0x60] sm:$0xf]
      %v287 = vld [vmem:[%s239 + $0x64] sm:$0xf]
      %v288 = vld [vmem:[%s239 + $0x68] sm:$0xf]
      %v289 = vld [vmem:[%s239 + $0x6c] sm:$0xf]
      %v290 = vld [vmem:[%s239 + $0x70] sm:$0xf]
      %v291 = vld [vmem:[%s239 + $0x74] sm:$0xf]
      %v292 = vld [vmem:[%s239 + $0x78] sm:$0xf]
      %v293 = vld [vmem:[%s239 + $0x7c] sm:$0xf]
      %v294 = vld [vmem:[%s1] sm:$0xf]
      %v295 = vld [vmem:[%s1 + $0x4] sm:$0xf]
      %v296 = vld [vmem:[%s1 + $0x8] sm:$0xf]
      %v297 = vld [vmem:[%s1 + $0xc] sm:$0xf]
      %v298 = vld [vmem:[%s1 + $0x10] sm:$0xf]
      %v299 = vld [vmem:[%s1 + $0x14] sm:$0xf]
      %v300 = vld [vmem:[%s1 + $0x18] sm:$0xf]
      %v301 = vld [vmem:[%s1 + $0x1c] sm:$0xf]
      %v302 = vld [vmem:[%s2] sm:$0x1]
      %v304 = vlaneseq
      %v305 = vshrl.u32 %v304, 7
      %v306 = vsub.s32 0, %v305
      %v307 = vrot.slane %v302, %v306
      %v341 = vunpack.c.l.b16 %v262
      %v342 = vunpack.c.l.b16 %v263
      %v343 = vunpack.c.l.b16 %v264
      %v344 = vunpack.c.l.b16 %v265
      %v345 = vunpack.c.l.b16 %v266
      %v346 = vunpack.c.l.b16 %v267
      %v347 = vunpack.c.l.b16 %v268
      %v348 = vunpack.c.l.b16 %v269
      %v349 = vunpack.c.l.b16 %v270
      %v350 = vunpack.c.l.b16 %v271
      %v351 = vunpack.c.l.b16 %v272
      %v352 = vunpack.c.l.b16 %v273
      %v353 = vunpack.c.l.b16 %v274
      %v354 = vunpack.c.l.b16 %v275
      %v355 = vunpack.c.l.b16 %v276
      %v356 = vunpack.c.l.b16 %v277
      %v357 = vunpack.c.l.b16 %v278
      %v358 = vunpack.c.l.b16 %v279
      %v359 = vunpack.c.l.b16 %v280
      %v360 = vunpack.c.l.b16 %v281
      %v361 = vunpack.c.l.b16 %v282
      %v362 = vunpack.c.l.b16 %v283
      %v363 = vunpack.c.l.b16 %v284
      %v364 = vunpack.c.l.b16 %v285
      %v365 = vunpack.c.l.b16 %v286
      %v366 = vunpack.c.l.b16 %v287
      %v367 = vunpack.c.l.b16 %v288
      %v368 = vunpack.c.l.b16 %v289
      %v369 = vunpack.c.l.b16 %v290
      %v370 = vunpack.c.l.b16 %v291
      %v371 = vunpack.c.l.b16 %v292
      %v372 = vunpack.c.l.b16 %v293
      %v373 = vpack.c.b16 %v342, %v341
      %v374 = vpack.c.b16 %v344, %v343
      %v375 = vpack.c.b16 %v346, %v345
      %v376 = vpack.c.b16 %v348, %v347
      %v377 = vpack.c.b16 %v350, %v349
      %v378 = vpack.c.b16 %v352, %v351
      %v379 = vpack.c.b16 %v354, %v353
      %v380 = vpack.c.b16 %v356, %v355
      %v381 = vpack.c.b16 %v358, %v357
      %v382 = vpack.c.b16 %v360, %v359
      %v383 = vpack.c.b16 %v362, %v361
      %v384 = vpack.c.b16 %v364, %v363
      %v385 = vpack.c.b16 %v366, %v365
      %v386 = vpack.c.b16 %v368, %v367
      %v387 = vpack.c.b16 %v370, %v369
      %v388 = vpack.c.b16 %v372, %v371
      %v397 = vunpack.c.l.b16 %v294
      %v398 = vunpack.c.l.b16 %v295
      %v399 = vunpack.c.l.b16 %v296
      %v400 = vunpack.c.l.b16 %v297
      %v401 = vunpack.c.l.b16 %v298
      %v402 = vunpack.c.l.b16 %v299
      %v403 = vunpack.c.l.b16 %v300
      %v404 = vunpack.c.l.b16 %v301
      %v405 = vpack.c.b16 %v398, %v397
      %v406 = vpack.c.b16 %v400, %v399
      %v407 = vpack.c.b16 %v402, %v401
      %v408 = vpack.c.b16 %v404, %v403
      %vm413 = vcmask 523264
      %v415 = vsel %vm413, %v373, 0
      %v418 = vsel %vm413, %v374, 0
      %v421 = vsel %vm413, %v375, 0
      %v424 = vsel %vm413, %v376, 0
      %v427 = vsel %vm413, %v377, 0
      %v430 = vsel %vm413, %v378, 0
      %v433 = vsel %vm413, %v379, 0
      %v436 = vsel %vm413, %v380, 0
      %v439 = vsel %vm413, %v381, 0
      %v442 = vsel %vm413, %v382, 0
      %v445 = vsel %vm413, %v383, 0
      %v448 = vsel %vm413, %v384, 0
      %v451 = vsel %vm413, %v385, 0
      %v454 = vsel %vm413, %v386, 0
      %v457 = vsel %vm413, %v387, 0
      %v460 = vsel %vm413, %v388, 0
      %462 = vmatprep.subr.bf16.mxu0 0
      %463 = vmatpush1.bf16.msra.mxu0 0
      %464 = vmatprep.subr.bf16.mxu0 0
      %465 = vmatpush1.bf16.msra.mxu0 0
      %466 = vmatprep.subr.bf16.mxu0 0
      %467 = vmatpush1.bf16.msra.mxu0 0
      %468 = vmatprep.subr.bf16.mxu0 0
      %469 = vmatpush1.bf16.msra.mxu0 0
      %470 = vmatprep.subr.bf16.mxu0 0
      %471 = vmatpush1.bf16.msra.mxu0 %v408
      %472 = vmatprep.subr.bf16.mxu0 0
      %473 = vmatpush1.bf16.msra.mxu0 %v407
      %474 = vmatprep.subr.bf16.mxu0 0
      %475 = vmatpush1.bf16.msra.mxu0 %v406
      %476 = vmatprep.subr.bf16.mxu0 0
      %477 = vmatpush1.bf16.msra.mxu0 %v405
      %478 = vmatprep.subr.bf16.mxu0 0
      %479 = vmatpush2.bf16.msra.mxu0 0
      %480 = vmatprep.subr.bf16.mxu0 0
      %481 = vmatpush2.bf16.msra.mxu0 0
      %482 = vmatprep.subr.bf16.mxu0 0
      %483 = vmatpush2.bf16.msra.mxu0 0
      %484 = vmatprep.subr.bf16.mxu0 0
      %485 = vmatpush2.bf16.msra.mxu0 0
      %486 = vmatprep.subr.bf16.mxu0 0
      %487 = vmatpush2.bf16.msra.mxu0 0
      %488 = vmatprep.subr.bf16.mxu0 0
      %489 = vmatpush2.bf16.msra.mxu0 0
      %490 = vmatprep.subr.bf16.mxu0 0
      %491 = vmatpush2.bf16.msra.mxu0 0
      %492 = vmatprep.subr.bf16.mxu0 0
      %493 = vmatpush2.bf16.msra.mxu0 0
      %494 = vmatprep.mubr.bf16.mxu0 0
      %495 = vmatmul.mubr.bf16.gmra.mxu0 %v415
      %v496 = vpop.f32.mrf.mxu0
      %v497 = vadd.f32 %v307, %v496
      %v498 = vpop.f32.mrf.mxu0
      %v499 = vpop.f32.mrf.mxu0
      %v500 = vadd.f32 %v307, %v499
      %v501 = vpop.f32.mrf.mxu0
      %502 = vmatprep.mubr.bf16.mxu0 0
      %503 = vmatmul.mubr.bf16.gmra.mxu0 %v418
      %v504 = vpop.f32.mrf.mxu0
      %v505 = vadd.f32 %v307, %v504
      %v506 = vpop.f32.mrf.mxu0
      %v507 = vpop.f32.mrf.mxu0
      %v508 = vadd.f32 %v307, %v507
      %v509 = vpop.f32.mrf.mxu0
      %510 = vmatprep.mubr.bf16.mxu0 0
      %511 = vmatmul.mubr.bf16.gmra.mxu0 %v421
      %v512 = vpop.f32.mrf.mxu0
      %v513 = vadd.f32 %v307, %v512
      %v514 = vpop.f32.mrf.mxu0
      %v515 = vpop.f32.mrf.mxu0
      %v516 = vadd.f32 %v307, %v515
      %v517 = vpop.f32.mrf.mxu0
      %518 = vmatprep.mubr.bf16.mxu0 0
      %519 = vmatmul.mubr.bf16.gmra.mxu0 %v424
      %v520 = vpop.f32.mrf.mxu0
      %v521 = vadd.f32 %v307, %v520
      %v522 = vpop.f32.mrf.mxu0
      %v523 = vpop.f32.mrf.mxu0
      %v524 = vadd.f32 %v307, %v523
      %v525 = vpop.f32.mrf.mxu0
      %526 = vmatprep.mubr.bf16.mxu0 0
      %527 = vmatmul.mubr.bf16.gmra.mxu0 %v427
      %v528 = vpop.f32.mrf.mxu0
      %v529 = vadd.f32 %v307, %v528
      %v530 = vpop.f32.mrf.mxu0
      %v531 = vpop.f32.mrf.mxu0
      %v532 = vadd.f32 %v307, %v531
      %v533 = vpop.f32.mrf.mxu0
      %534 = vmatprep.mubr.bf16.mxu0 0
      %535 = vmatmul.mubr.bf16.gmra.mxu0 %v430
      %v536 = vpop.f32.mrf.mxu0
      %v537 = vadd.f32 %v307, %v536
      %v538 = vpop.f32.mrf.mxu0
      %v539 = vpop.f32.mrf.mxu0
      %v540 = vadd.f32 %v307, %v539
      %v541 = vpop.f32.mrf.mxu0
      %542 = vmatprep.mubr.bf16.mxu0 0
      %543 = vmatmul.mubr.bf16.gmra.mxu0 %v433
      %v544 = vpop.f32.mrf.mxu0
      %v545 = vadd.f32 %v307, %v544
      %v546 = vpop.f32.mrf.mxu0
      %v547 = vpop.f32.mrf.mxu0
      %v548 = vadd.f32 %v307, %v547
      %v549 = vpop.f32.mrf.mxu0
      %550 = vmatprep.mubr.bf16.mxu0 0
      %551 = vmatmul.mubr.bf16.gmra.mxu0 %v436
      %v552 = vpop.f32.mrf.mxu0
      %v553 = vadd.f32 %v307, %v552
      %v554 = vpop.f32.mrf.mxu0
      %v555 = vpop.f32.mrf.mxu0
      %v556 = vadd.f32 %v307, %v555
      %v557 = vpop.f32.mrf.mxu0
      %558 = vmatprep.mubr.bf16.mxu0 0
      %559 = vmatmul.mubr.bf16.gmra.mxu0 %v439
      %v560 = vpop.f32.mrf.mxu0
      %v561 = vadd.f32 %v307, %v560
      %v562 = vpop.f32.mrf.mxu0
      %v563 = vpop.f32.mrf.mxu0
      %v564 = vadd.f32 %v307, %v563
      %v565 = vpop.f32.mrf.mxu0
      %566 = vmatprep.mubr.bf16.mxu0 0
      %567 = vmatmul.mubr.bf16.gmra.mxu0 %v442
      %v568 = vpop.f32.mrf.mxu0
      %v569 = vadd.f32 %v307, %v568
      %v570 = vpop.f32.mrf.mxu0
      %v571 = vpop.f32.mrf.mxu0
      %v572 = vadd.f32 %v307, %v571
      %v573 = vpop.f32.mrf.mxu0
      %574 = vmatprep.mubr.bf16.mxu0 0
      %575 = vmatmul.mubr.bf16.gmra.mxu0 %v445
      %v576 = vpop.f32.mrf.mxu0
      %v577 = vadd.f32 %v307, %v576
      %v578 = vpop.f32.mrf.mxu0
      %v579 = vpop.f32.mrf.mxu0
      %v580 = vadd.f32 %v307, %v579
      %v581 = vpop.f32.mrf.mxu0
      %582 = vmatprep.mubr.bf16.mxu0 0
      %583 = vmatmul.mubr.bf16.gmra.mxu0 %v448
      %v584 = vpop.f32.mrf.mxu0
      %v585 = vadd.f32 %v307, %v584
      %v586 = vpop.f32.mrf.mxu0
      %v587 = vpop.f32.mrf.mxu0
      %v588 = vadd.f32 %v307, %v587
      %v589 = vpop.f32.mrf.mxu0
      %590 = vmatprep.mubr.bf16.mxu0 0
      %591 = vmatmul.mubr.bf16.gmra.mxu0 %v451
      %v592 = vpop.f32.mrf.mxu0
      %v593 = vadd.f32 %v307, %v592
      %v594 = vpop.f32.mrf.mxu0
      %v595 = vpop.f32.mrf.mxu0
      %v596 = vadd.f32 %v307, %v595
      %v597 = vpop.f32.mrf.mxu0
      %598 = vmatprep.mubr.bf16.mxu0 0
      %599 = vmatmul.mubr.bf16.gmra.mxu0 %v454
      %v600 = vpop.f32.mrf.mxu0
      %v601 = vadd.f32 %v307, %v600
      %v602 = vpop.f32.mrf.mxu0
      %v603 = vpop.f32.mrf.mxu0
      %v604 = vadd.f32 %v307, %v603
      %v605 = vpop.f32.mrf.mxu0
      %606 = vmatprep.mubr.bf16.mxu0 0
      %607 = vmatmul.mubr.bf16.gmra.mxu0 %v457
      %v608 = vpop.f32.mrf.mxu0
      %v609 = vadd.f32 %v307, %v608
      %v610 = vpop.f32.mrf.mxu0
      %v611 = vpop.f32.mrf.mxu0
      %v612 = vadd.f32 %v307, %v611
      %v613 = vpop.f32.mrf.mxu0
      %614 = vmatprep.mubr.bf16.mxu0 0
      %615 = vmatmul.mubr.bf16.gmra.mxu0 %v460
      %v616 = vpop.f32.mrf.mxu0
      %v617 = vadd.f32 %v307, %v616
      %v618 = vpop.f32.mrf.mxu0
      %v619 = vpop.f32.mrf.mxu0
      %v620 = vadd.f32 %v307, %v619
      %v621 = vpop.f32.mrf.mxu0
      %622 = vdwg.mxu0
      %v623 = vpack.c.bf16 %v500, %v497
      %v624 = vpack.c.bf16 %v508, %v505
      %v625 = vpack.c.bf16 %v516, %v513
      %v626 = vpack.c.bf16 %v524, %v521
      %v627 = vpack.c.bf16 %v532, %v529
      %v628 = vpack.c.bf16 %v540, %v537
      %v629 = vpack.c.bf16 %v548, %v545
      %v630 = vpack.c.bf16 %v556, %v553
      %v631 = vpack.c.bf16 %v564, %v561
      %v632 = vpack.c.bf16 %v572, %v569
      %v633 = vpack.c.bf16 %v580, %v577
      %v634 = vpack.c.bf16 %v588, %v585
      %v635 = vpack.c.bf16 %v596, %v593
      %v636 = vpack.c.bf16 %v604, %v601
      %v637 = vpack.c.bf16 %v612, %v609
      %v638 = vpack.c.bf16 %v620, %v617
      %v655 = vunpack.c.l.b16 %v623
      %v656 = vunpack.c.h.b16 %v623
      %v657 = vunpack.c.l.b16 %v624
      %v658 = vunpack.c.h.b16 %v624
      %v659 = vunpack.c.l.b16 %v625
      %v660 = vunpack.c.h.b16 %v625
      %v661 = vunpack.c.l.b16 %v626
      %v662 = vunpack.c.h.b16 %v626
      %v663 = vunpack.c.l.b16 %v627
      %v664 = vunpack.c.h.b16 %v627
      %v665 = vunpack.c.l.b16 %v628
      %v666 = vunpack.c.h.b16 %v628
      %v667 = vunpack.c.l.b16 %v629
      %v668 = vunpack.c.h.b16 %v629
      %v669 = vunpack.c.l.b16 %v630
      %v670 = vunpack.c.h.b16 %v630
      %v671 = vunpack.c.l.b16 %v631
      %v672 = vunpack.c.h.b16 %v631
      %v673 = vunpack.c.l.b16 %v632
      %v674 = vunpack.c.h.b16 %v632
      %v675 = vunpack.c.l.b16 %v633
      %v676 = vunpack.c.h.b16 %v633
      %v677 = vunpack.c.l.b16 %v634
      %v678 = vunpack.c.h.b16 %v634
      %v679 = vunpack.c.l.b16 %v635
      %v680 = vunpack.c.h.b16 %v635
      %v681 = vunpack.c.l.b16 %v636
      %v682 = vunpack.c.h.b16 %v636
      %v683 = vunpack.c.l.b16 %v637
      %v684 = vunpack.c.h.b16 %v637
      %v685 = vunpack.c.l.b16 %v638
      %v686 = vunpack.c.h.b16 %v638
      %v687 = vpack.c.b16 %v655, %v655
      %v688 = vpack.c.b16 %v656, %v656
      %v689 = vpack.c.b16 %v657, %v657
      %v690 = vpack.c.b16 %v658, %v658
      %v691 = vpack.c.b16 %v659, %v659
      %v692 = vpack.c.b16 %v660, %v660
      %v693 = vpack.c.b16 %v661, %v661
      %v694 = vpack.c.b16 %v662, %v662
      %v695 = vpack.c.b16 %v663, %v663
      %v696 = vpack.c.b16 %v664, %v664
      %v697 = vpack.c.b16 %v665, %v665
      %v698 = vpack.c.b16 %v666, %v666
      %v699 = vpack.c.b16 %v667, %v667
      %v700 = vpack.c.b16 %v668, %v668
      %v701 = vpack.c.b16 %v669, %v669
      %v702 = vpack.c.b16 %v670, %v670
      %v703 = vpack.c.b16 %v671, %v671
      %v704 = vpack.c.b16 %v672, %v672
      %v705 = vpack.c.b16 %v673, %v673
      %v706 = vpack.c.b16 %v674, %v674
      %v707 = vpack.c.b16 %v675, %v675
      %v708 = vpack.c.b16 %v676, %v676
      %v709 = vpack.c.b16 %v677, %v677
      %v710 = vpack.c.b16 %v678, %v678
      %v711 = vpack.c.b16 %v679, %v679
      %v712 = vpack.c.b16 %v680, %v680
      %v713 = vpack.c.b16 %v681, %v681
      %v714 = vpack.c.b16 %v682, %v682
      %v715 = vpack.c.b16 %v683, %v683
      %v716 = vpack.c.b16 %v684, %v684
      %v717 = vpack.c.b16 %v685, %v685
      %v718 = vpack.c.b16 %v686, %v686
      %vm751 = vcmask 519168
      %752 = vst.msk [vmem:[%s249] sm:$0xf] %vm751, %v687
      %753 = vst.msk [vmem:[%s249 + $0x4] sm:$0xf] %vm751, %v688
      %754 = vst.msk [vmem:[%s249 + $0x8] sm:$0xf] %vm751, %v689
      %755 = vst.msk [vmem:[%s249 + $0xc] sm:$0xf] %vm751, %v690
      %756 = vst.msk [vmem:[%s249 + $0x10] sm:$0xf] %vm751, %v691
      %757 = vst.msk [vmem:[%s249 + $0x14] sm:$0xf] %vm751, %v692
      %758 = vst.msk [vmem:[%s249 + $0x18] sm:$0xf] %vm751, %v693
      %759 = vst.msk [vmem:[%s249 + $0x1c] sm:$0xf] %vm751, %v694
      %760 = vst.msk [vmem:[%s249 + $0x20] sm:$0xf] %vm751, %v695
      %761 = vst.msk [vmem:[%s249 + $0x24] sm:$0xf] %vm751, %v696
      %762 = vst.msk [vmem:[%s249 + $0x28] sm:$0xf] %vm751, %v697
      %763 = vst.msk [vmem:[%s249 + $0x2c] sm:$0xf] %vm751, %v698
      %764 = vst.msk [vmem:[%s249 + $0x30] sm:$0xf] %vm751, %v699
      %765 = vst.msk [vmem:[%s249 + $0x34] sm:$0xf] %vm751, %v700
      %766 = vst.msk [vmem:[%s249 + $0x38] sm:$0xf] %vm751, %v701
      %767 = vst.msk [vmem:[%s249 + $0x3c] sm:$0xf] %vm751, %v702
      %768 = vst.msk [vmem:[%s249 + $0x40] sm:$0xf] %vm751, %v703
      %769 = vst.msk [vmem:[%s249 + $0x44] sm:$0xf] %vm751, %v704
      %770 = vst.msk [vmem:[%s249 + $0x48] sm:$0xf] %vm751, %v705
      %771 = vst.msk [vmem:[%s249 + $0x4c] sm:$0xf] %vm751, %v706
      %772 = vst.msk [vmem:[%s249 + $0x50] sm:$0xf] %vm751, %v707
      %773 = vst.msk [vmem:[%s249 + $0x54] sm:$0xf] %vm751, %v708
      %774 = vst.msk [vmem:[%s249 + $0x58] sm:$0xf] %vm751, %v709
      %775 = vst.msk [vmem:[%s249 + $0x5c] sm:$0xf] %vm751, %v710
      %776 = vst.msk [vmem:[%s249 + $0x60] sm:$0xf] %vm751, %v711
      %777 = vst.msk [vmem:[%s249 + $0x64] sm:$0xf] %vm751, %v712
      %778 = vst.msk [vmem:[%s249 + $0x68] sm:$0xf] %vm751, %v713
      %779 = vst.msk [vmem:[%s249 + $0x6c] sm:$0xf] %vm751, %v714
      %780 = vst.msk [vmem:[%s249 + $0x70] sm:$0xf] %vm751, %v715
      %781 = vst.msk [vmem:[%s249 + $0x74] sm:$0xf] %vm751, %v716
      %782 = vst.msk [vmem:[%s249 + $0x78] sm:$0xf] %vm751, %v717
      %783 = vst.msk [vmem:[%s249 + $0x7c] sm:$0xf] %vm751, %v718
      %784 = vrot.lane.b32.xlu0 %v687, 64
      %v785 = vpop.permute.xlu0 %784
      %786 = vrot.lane.b32.xlu0 %v688, 64
      %v787 = vpop.permute.xlu0 %786
      %788 = vrot.lane.b32.xlu0 %v689, 64
      %v789 = vpop.permute.xlu0 %788
      %790 = vrot.lane.b32.xlu0 %v690, 64
      %v791 = vpop.permute.xlu0 %790
      %792 = vrot.lane.b32.xlu0 %v691, 64
      %v793 = vpop.permute.xlu0 %792
      %794 = vrot.lane.b32.xlu0 %v692, 64
      %v795 = vpop.permute.xlu0 %794
      %796 = vrot.lane.b32.xlu0 %v693, 64
      %v797 = vpop.permute.xlu0 %796
      %798 = vrot.lane.b32.xlu0 %v694, 64
      %v799 = vpop.permute.xlu0 %798
      %800 = vrot.lane.b32.xlu0 %v695, 64
      %v801 = vpop.permute.xlu0 %800
      %802 = vrot.lane.b32.xlu0 %v696, 64
      %v803 = vpop.permute.xlu0 %802
      %804 = vrot.lane.b32.xlu0 %v697, 64
      %v805 = vpop.permute.xlu0 %804
      %806 = vrot.lane.b32.xlu0 %v698, 64
      %v807 = vpop.permute.xlu0 %806
      %808 = vrot.lane.b32.xlu0 %v699, 64
      %v809 = vpop.permute.xlu0 %808
      %810 = vrot.lane.b32.xlu0 %v700, 64
      %v811 = vpop.permute.xlu0 %810
      %812 = vrot.lane.b32.xlu0 %v701, 64
      %v813 = vpop.permute.xlu0 %812
      %814 = vrot.lane.b32.xlu0 %v702, 64
      %v815 = vpop.permute.xlu0 %814
      %816 = vrot.lane.b32.xlu0 %v703, 64
      %v817 = vpop.permute.xlu0 %816
      %818 = vrot.lane.b32.xlu0 %v704, 64
      %v819 = vpop.permute.xlu0 %818
      %820 = vrot.lane.b32.xlu0 %v705, 64
      %v821 = vpop.permute.xlu0 %820
      %822 = vrot.lane.b32.xlu0 %v706, 64
      %v823 = vpop.permute.xlu0 %822
      %824 = vrot.lane.b32.xlu0 %v707, 64
      %v825 = vpop.permute.xlu0 %824
      %826 = vrot.lane.b32.xlu0 %v708, 64
      %v827 = vpop.permute.xlu0 %826
      %828 = vrot.lane.b32.xlu0 %v709, 64
      %v829 = vpop.permute.xlu0 %828
      %830 = vrot.lane.b32.xlu0 %v710, 64
      %v831 = vpop.permute.xlu0 %830
      %832 = vrot.lane.b32.xlu0 %v711, 64
      %v833 = vpop.permute.xlu0 %832
      %834 = vrot.lane.b32.xlu0 %v712, 64
      %v835 = vpop.permute.xlu0 %834
      %836 = vrot.lane.b32.xlu0 %v713, 64
      %v837 = vpop.permute.xlu0 %836
      %838 = vrot.lane.b32.xlu0 %v714, 64
      %v839 = vpop.permute.xlu0 %838
      %840 = vrot.lane.b32.xlu0 %v715, 64
      %v841 = vpop.permute.xlu0 %840
      %842 = vrot.lane.b32.xlu0 %v716, 64
      %v843 = vpop.permute.xlu0 %842
      %844 = vrot.lane.b32.xlu0 %v717, 64
      %v845 = vpop.permute.xlu0 %844
      %846 = vrot.lane.b32.xlu0 %v718, 64
      %v847 = vpop.permute.xlu0 %846
      %880 = vst.msk [vmem:[%s259] sm:$0xf] %vm751, %v785
      %881 = vst.msk [vmem:[%s259 + $0x4] sm:$0xf] %vm751, %v787
      %882 = vst.msk [vmem:[%s259 + $0x8] sm:$0xf] %vm751, %v789
      %883 = vst.msk [vmem:[%s259 + $0xc] sm:$0xf] %vm751, %v791
      %884 = vst.msk [vmem:[%s259 + $0x10] sm:$0xf] %vm751, %v793
      %885 = vst.msk [vmem:[%s259 + $0x14] sm:$0xf] %vm751, %v795
      %886 = vst.msk [vmem:[%s259 + $0x18] sm:$0xf] %vm751, %v797
      %887 = vst.msk [vmem:[%s259 + $0x1c] sm:$0xf] %vm751, %v799
      %888 = vst.msk [vmem:[%s259 + $0x20] sm:$0xf] %vm751, %v801
      %889 = vst.msk [vmem:[%s259 + $0x24] sm:$0xf] %vm751, %v803
      %890 = vst.msk [vmem:[%s259 + $0x28] sm:$0xf] %vm751, %v805
      %891 = vst.msk [vmem:[%s259 + $0x2c] sm:$0xf] %vm751, %v807
      %892 = vst.msk [vmem:[%s259 + $0x30] sm:$0xf] %vm751, %v809
      %893 = vst.msk [vmem:[%s259 + $0x34] sm:$0xf] %vm751, %v811
      %894 = vst.msk [vmem:[%s259 + $0x38] sm:$0xf] %vm751, %v813
      %895 = vst.msk [vmem:[%s259 + $0x3c] sm:$0xf] %vm751, %v815
      %896 = vst.msk [vmem:[%s259 + $0x40] sm:$0xf] %vm751, %v817
      %897 = vst.msk [vmem:[%s259 + $0x44] sm:$0xf] %vm751, %v819
      %898 = vst.msk [vmem:[%s259 + $0x48] sm:$0xf] %vm751, %v821
      %899 = vst.msk [vmem:[%s259 + $0x4c] sm:$0xf] %vm751, %v823
      %900 = vst.msk [vmem:[%s259 + $0x50] sm:$0xf] %vm751, %v825
      %901 = vst.msk [vmem:[%s259 + $0x54] sm:$0xf] %vm751, %v827
      %902 = vst.msk [vmem:[%s259 + $0x58] sm:$0xf] %vm751, %v829
      %903 = vst.msk [vmem:[%s259 + $0x5c] sm:$0xf] %vm751, %v831
      %904 = vst.msk [vmem:[%s259 + $0x60] sm:$0xf] %vm751, %v833
      %905 = vst.msk [vmem:[%s259 + $0x64] sm:$0xf] %vm751, %v835
      %906 = vst.msk [vmem:[%s259 + $0x68] sm:$0xf] %vm751, %v837
      %907 = vst.msk [vmem:[%s259 + $0x6c] sm:$0xf] %vm751, %v839
      %908 = vst.msk [vmem:[%s259 + $0x70] sm:$0xf] %vm751, %v841
      %909 = vst.msk [vmem:[%s259 + $0x74] sm:$0xf] %vm751, %v843
      %910 = vst.msk [vmem:[%s259 + $0x78] sm:$0xf] %vm751, %v845
      %911 = vst.msk [vmem:[%s259 + $0x7c] sm:$0xf] %vm751, %v847
      %s912 = smul.u32 32, %s21
      %p913 = scmp.lt.s32.totalorder %s20, 1
      %s914 = scalar_select %p913, %s20, 1
      %p915 = scmp.lt.s32.totalorder %s912, 31
      %s916 = scalar_select %p915, %s912, 31
      %s917 = smul.addr %s914, 32
      %s918 = sadd.s32 %s916, %s917
      %s919 = smul.addr %s918, 4
      %s920 = scalar_lea.vmem %s3, %s919
      %s921 = smul.u32 32, %s21
      %p922 = scmp.lt.s32.totalorder %s20, 1
      %s923 = scalar_select %p922, %s20, 1
      %p924 = scmp.lt.s32.totalorder %s921, 31
      %s925 = scalar_select %p924, %s921, 31
      %s926 = smul.addr %s923, 32
      %s927 = sadd.s32 %s925, %s926
      %s928 = smul.addr %s927, 4
      %s929 = scalar_lea.vmem %s4, %s928
      // Predicated region
      $region33: #{tpu_custom_call.1} parent=31 // pred_check
        %p930 = pneg %p118
      $region34: #{tpu_custom_call.1} parent=31 // pred_check_branch
        %932 = sbr.rel (%p930) target = $region36
      $region35: #{tpu_custom_call.1} parent=31 // pred_region
        %s933 = smul.u32 32, %s21
      $region36: #{tpu_custom_call.1} parent=31 // pred_fallthru
        _
      // Predicated region
      $region37: #{tpu_custom_call.1} parent=31 // pred_check
        %p934 = pneg %p146
      $region38: #{tpu_custom_call.1} parent=31 // pred_check_branch
        %936 = sbr.rel (%p934) target = $region40
      $region39: #{tpu_custom_call.1} parent=31 // pred_region
        %s937 = smul.u32 32, %s21
      $region40: #{tpu_custom_call.1} parent=31 // pred_fallthru
        _
    $region32: #{tpu_custom_call.1} parent=5 // pred_fallthru
      _
    %p938 = scmp.le.s32.totalorder 2, %s11
    // Predicated region
    $region41: #{tpu_custom_call.1} parent=5 // pred_check
      %p939 = pneg %p938
    $region42: #{tpu_custom_call.1} parent=5 // pred_check_branch
      %941 = sbr.rel (%p939) target = $region44
    $region43: #{tpu_custom_call.1} parent=5 // pred_region
      %s942 = ssub.s32 %s11, 2
      // Predicated region
      $region45: #{tpu_custom_call.1} parent=43 // pred_check
        %p943 = pneg %p124
      $region46: #{tpu_custom_call.1} parent=43 // pred_check_branch
        %945 = sbr.rel (%p943) target = $region48
      $region47: #{tpu_custom_call.1} parent=43 // pred_region
        %s946 = smul.u32 32, %s23
        %p947 = scmp.lt.s32.totalorder %s22, 1
        %s948 = scalar_select %p947, %s22, 1
        %p949 = scmp.lt.s32.totalorder %s946, 31
        %s950 = scalar_select %p949, %s946, 31
        %s951 = smul.addr %s948, 32
        %s952 = sadd.s32 %s950, %s951
        %s953 = smul.addr %s952, 4
        %s954 = scalar_lea.vmem %s3, %s953
      $region48: #{tpu_custom_call.1} parent=43 // pred_fallthru
        _
      // Predicated region
      $region49: #{tpu_custom_call.1} parent=43 // pred_check
        %p955 = pneg %p152
      $region50: #{tpu_custom_call.1} parent=43 // pred_check_branch
        %957 = sbr.rel (%p955) target = $region52
      $region51: #{tpu_custom_call.1} parent=43 // pred_region
        %s958 = smul.u32 32, %s23
        %p959 = scmp.lt.s32.totalorder %s22, 1
        %s960 = scalar_select %p959, %s22, 1
        %p961 = scmp.lt.s32.totalorder %s958, 31
        %s962 = scalar_select %p961, %s958, 31
        %s963 = smul.addr %s960, 32
        %s964 = sadd.s32 %s962, %s963
        %s965 = smul.addr %s964, 4
        %s966 = scalar_lea.vmem %s4, %s965
      $region52: #{tpu_custom_call.1} parent=43 // pred_fallthru
        _
    $region44: #{tpu_custom_call.1} parent=5 // pred_fallthru
      _
  $region6: #{tpu_custom_call.1} parent=0 // loop_footer
    %s15 = sadd.s32 1, %s11
  $region7: #{tpu_custom_call.1} parent=0 // loop_footer_branch
    %10 = sbr.rel target = $region3
  $region8: #{tpu_custom_call.1} parent=0 // loop_exit
    _

</llo_original>
